<compile_context>
chip_gen: v6e
topology: v6e:2x2x1
jax: 0.10.0
libtpu: 0.0.40
codegen_flags: <defaults>
</compile_context>

<pallas_src>
import functools

import jax
import jax.numpy as jnp
import numpy as np
from jax.experimental import pallas as pl
from jax.experimental.pallas import tpu as pltpu

NEG_SLOPE = 0.2   # negative_slope of LeakyReLU
LANE = 128
NEG_BIG = -1e30   # "masked edge" logit


def _round_up(x, m):
    return (x + m - 1) // m * m


# ---------------------------------------------------------------------------
# Kernel 1: fused node-side projections (grid over node-row tiles, "parallel").
# One bf16 matmul produces, for every node s (lane-dense, 128-padded columns):
#   m_r[s]  = feat[s] @ W_rel[r]     for all relations r  -> msg_ref[:, r*Fp:(r+1)*Fp]
#   loop[s] = feat[s] @ loop_weight                       -> loop_ref
#   el[s]   = feat[s] @ (W_fc @ attn_l^T)                 -> lr_ref[:, 0]
#   er[s]   = feat[s] @ (W_fc @ attn_r^T)                 -> lr_ref[:, 1]
# ---------------------------------------------------------------------------
def _proj_kernel(feat_ref, wbig_ref, msg_ref, loop_ref, lr_ref, *, rf, f_pad):
    feat = feat_ref[...].astype(jnp.bfloat16)                       # (T, Din)
    p = jnp.dot(feat, wbig_ref[...],
                preferred_element_type=jnp.float32)                 # (T, rf+Fp+128)
    msg_ref[...] = p[:, :rf].astype(jnp.bfloat16)                   # relational messages
    loop_ref[...] = p[:, rf:rf + f_pad]                             # self-loop term
    lr_ref[...] = p[:, rf + f_pad:]                                 # lane0 = el, lane1 = er
    # TODO(synk): keep the self-loop path in f32 (separate small matmul) if tighter
    # parity with the f32 PyTorch reference is ever required.


# ---------------------------------------------------------------------------
# Kernel 2: masked ONLINE edge softmax + relation-aware aggregation.
# grid = (dst_tiles [parallel], src_tiles [arbitrary/reduction]).
# ---------------------------------------------------------------------------
def _agg_kernel(etype_ref, er_ref, el_ref, loop_ref, msg_ref, bias_ref, out_ref,
                m_sc, l_sc, acc_sc, *, num_rels, f_pad):
    s = pl.program_id(1)

    @pl.when(s == 0)
    def _():
        m_sc[...] = jnp.full_like(m_sc, NEG_BIG)
        l_sc[...] = jnp.zeros_like(l_sc)
        acc_sc[...] = jnp.zeros_like(acc_sc)

    etype = etype_ref[...].astype(jnp.int32)       # int8 HBM stream, upcast once
    mask = etype >= 0                              # (Td, Ts), -1 => no edge

    # e[d, s] = leaky_relu(el[s] + er[d]); softmax math kept in f32
    e = er_ref[...] + el_ref[...]                  # (Td,1) + (1,Ts) -> (Td, Ts)
    e = jnp.where(e >= 0.0, e, NEG_SLOPE * e)
    e = jnp.where(mask, e, jnp.float32(NEG_BIG))

    # online softmax update (running max / denom / accumulator in scratch)
    m_prev = m_sc[...]
    m_new = jnp.maximum(m_prev, jnp.max(e, axis=1, keepdims=True))
    corr = jnp.exp(m_prev - m_new)                 # rescale of previous partials
    # NB: the mask-select below is load-bearing (zero-in-degree / padded rows).
    p = jnp.where(mask, jnp.exp(e - m_new), 0.0)   # (Td, Ts) f32

    m_sc[...] = m_new
    l_sc[...] = corr * l_sc[...] + jnp.sum(p, axis=1, keepdims=True)

    # acc[d] += sum_r (p * [etype == r]) @ m_r   (bf16 operands, f32 accumulation)
    p_bf = p.astype(jnp.bfloat16)                  # cast once, outside the loop
    zero_bf = jnp.zeros_like(p_bf)
    acc = acc_sc[...] * corr
    # static unroll: num_rels is small (use lax.fori_loop if R >= ~8 to bound vregs)
    for r in range(num_rels):
        a_r = jnp.where(etype == r, p_bf, zero_bf)                  # one select per rel
        acc = acc + jnp.dot(a_r, msg_ref[:, r * f_pad:(r + 1) * f_pad],
                            preferred_element_type=jnp.float32)
    acc_sc[...] = acc

    @pl.when(s == pl.num_programs(1) - 1)
    def _():
        denom = l_sc[...]
        denom = jnp.where(denom > 0.0, denom, 1.0)   # zero-in-degree rows -> alpha = 0
        out_ref[...] = (acc_sc[...] * pl.reciprocal(denom, approx=True)
                        + loop_ref[...] + bias_ref[...])
    # TODO(synk): layer_norm / activation / dropout branches are disabled by the
    # module defaults (layer_norm=False, activation=None, eval-mode dropout),
    # so they are intentionally omitted.


def horelgat_forward(feat, etype_enc, params):
    """feat: (N, D_in) f32.  etype_enc: (N, N) int, etype_enc[d, s] = relation id of
    edge s -> d, or -1 if the edge does not exist (single packed edge-metadata array)."""
    n, d_in = feat.shape
    r_rels, _, f_out = params["w_rel"].shape
    f_pad = _round_up(f_out, LANE)                 # lane-dense message / output width
    rf = r_rels * f_pad

    # ---- tile selection -------------------------------------------------------
    # Conservative tiles sized for the v7x 64 MiB VMEM budget (T_dst=256, T_src=1024,
    # ~2.5 MiB/step at R=3); also fine on v5e/v6e (128 MiB), where larger src tiles
    # would only shave grid-step overhead.
    n_pad = _round_up(max(n, 1), 32)               # 32: clean int8 sublane packing
    if n_pad <= 256:
        t_dst = t_src = n_pad
    elif n_pad <= 1024:
        n_pad = _round_up(n_pad, 256)
        t_dst, t_src = 256, n_pad
    else:
        n_pad = _round_up(n_pad, 1024)
        t_dst, t_src = 256, 1024
    if n_pad % 512 == 0:
        t_node = 512
    elif n_pad % 256 == 0:
        t_node = 256
    else:
        t_node = n_pad

    # ---- parameter packing (weight-only preprocessing) ------------------------
    w_fc = params["w_fc"].astype(jnp.float32)
    w_rel = params["w_rel"].astype(jnp.float32)
    loop_w = params["loop_w"].astype(jnp.float32)
    pad_c = f_pad - f_out
    v_l = w_fc @ params["attn_l"].astype(jnp.float32)[0]   # fold: el = feat @ (W_fc attn_l)
    v_r = w_fc @ params["attn_r"].astype(jnp.float32)[0]
    att_cols = (jnp.zeros((d_in, LANE), jnp.float32)
                .at[:, 0].set(v_l).at[:, 1].set(v_r))
    w_big = jnp.concatenate(
        [jnp.pad(w_rel[r], ((0, 0), (0, pad_c))) for r in range(r_rels)]
        + [jnp.pad(loop_w, ((0, 0), (0, pad_c))), att_cols],
        axis=1).astype(jnp.bfloat16)                        # (D_in, rf + Fp + 128)
    bias = jnp.zeros((1, f_pad), jnp.float32).at[0, :f_out].set(
        params["h_bias"].astype(jnp.float32)[0])

    # ---- activation / edge-metadata padding -----------------------------------
    feat_p = jnp.zeros((n_pad, d_in), jnp.float32).at[:n].set(feat.astype(jnp.float32))
    et_p = jnp.full((n_pad, n_pad), -1, jnp.int8).at[:n, :n].set(
        etype_enc.astype(jnp.int8))                         # int8: 4x less HBM traffic

    w_cols = rf + f_pad + LANE
    n_node_tiles = n_pad // t_node

    # ---- kernel 1: fused projections -------------------------------------------
    msg, loop_h, lr = pl.pallas_call(
        functools.partial(_proj_kernel, rf=rf, f_pad=f_pad),
        grid=(n_node_tiles,),
        in_specs=[pl.BlockSpec((t_node, d_in), lambda i: (i, 0)),
                  pl.BlockSpec((d_in, w_cols), lambda i: (0, 0))],
        out_specs=(pl.BlockSpec((t_node, rf), lambda i: (i, 0)),
                   pl.BlockSpec((t_node, f_pad), lambda i: (i, 0)),
                   pl.BlockSpec((t_node, LANE), lambda i: (i, 0))),
        out_shape=(jax.ShapeDtypeStruct((n_pad, rf), jnp.bfloat16),
                   jax.ShapeDtypeStruct((n_pad, f_pad), jnp.float32),
                   jax.ShapeDtypeStruct((n_pad, LANE), jnp.float32)),
        compiler_params=pltpu.CompilerParams(
            dimension_semantics=("parallel",),
            vmem_limit_bytes=48 * 1024 * 1024),
    )(feat_p, w_big)

    # tiny layout plumbing: logits as a lane row (el) / sublane column (er)
    el_row = lr[:, 0][None, :]                     # (1, n_pad)
    er_col = lr[:, 1][:, None]                     # (n_pad, 1)

    n_dst_tiles = n_pad // t_dst
    n_src_tiles = n_pad // t_src

    # ---- kernel 2: streaming edge softmax + aggregation ------------------------
    # dst axis leads and is "parallel" (megacore / v7x 2-TC sharding); src axis is the
    # streamed reduction ("arbitrary"), so per-step VMEM no longer grows with N.
    # TODO(synk): for genuinely sparse graphs a padded-neighbor-list (CSR) layout with
    # scalar-prefetched indices would scale O(E) instead of O(N^2).
    out = pl.pallas_call(
        functools.partial(_agg_kernel, num_rels=r_rels, f_pad=f_pad),
        grid=(n_dst_tiles, n_src_tiles),
        in_specs=[pl.BlockSpec((t_dst, t_src), lambda d, s: (d, s)),   # etype (int8)
                  pl.BlockSpec((t_dst, 1), lambda d, s: (d, 0)),       # er (dst tile)
                  pl.BlockSpec((1, t_src), lambda d, s: (0, s)),       # el (src tile)
                  pl.BlockSpec((t_dst, f_pad), lambda d, s: (d, 0)),   # self-loop term
                  pl.BlockSpec((t_src, rf), lambda d, s: (s, 0)),      # messages (src tile)
                  pl.BlockSpec((1, f_pad), lambda d, s: (0, 0))],      # bias
        out_specs=pl.BlockSpec((t_dst, f_pad), lambda d, s: (d, 0)),
        out_shape=jax.ShapeDtypeStruct((n_pad, f_pad), jnp.float32),
        scratch_shapes=[pltpu.VMEM((t_dst, 1), jnp.float32),           # running max
                        pltpu.VMEM((t_dst, 1), jnp.float32),           # running denom
                        pltpu.VMEM((t_dst, f_pad), jnp.float32)],      # running acc
        compiler_params=pltpu.CompilerParams(
            dimension_semantics=("parallel", "arbitrary"),
            vmem_limit_bytes=48 * 1024 * 1024),
    )(et_p, er_col, el_row, loop_h, msg, bias)

    return out[:n, :f_out]


def reference_numpy(feat, adj, etype, params):
    """Edge-list reference replicating the DGL semantics."""
    featn = np.asarray(feat)
    adjn = np.asarray(adj)
    etn = np.asarray(etype)
    wfc = np.asarray(params["w_fc"])
    al = np.asarray(params["attn_l"])[0]
    ar = np.asarray(params["attn_r"])[0]
    wrel = np.asarray(params["w_rel"])
    lw = np.asarray(params["loop_w"])
    b = np.asarray(params["h_bias"])[0]

    n = featn.shape[0]
    f_out = lw.shape[1]
    fsrc = featn @ wfc
    el = fsrc @ al
    er = fsrc @ ar
    out = np.zeros((n, f_out), np.float32)
    for d in range(n):
        srcs = np.nonzero(adjn[d])[0]
        if len(srcs) == 0:
            continue
        e = el[srcs] + er[d]
        e = np.where(e >= 0, e, NEG_SLOPE * e)
        a = np.exp(e - e.max())
        a = a / a.sum()
        for w, s in zip(a, srcs):
            out[d] += w * (featn[s] @ wrel[etn[d, s]])
    out = out + b + featn @ lw
    return out


if __name__ == "__main__":
    N, D_IN, F_OUT, H, R = 8, 32, 32, 1, 3

    key = jax.random.PRNGKey(0)
    ks = jax.random.split(key, 8)
    feat = jax.random.normal(ks[0], (N, D_IN), jnp.float32)
    params = {
        "w_fc":   jax.random.normal(ks[1], (D_IN, H * F_OUT), jnp.float32) * 0.1,
        "attn_l": jax.random.normal(ks[2], (1, F_OUT), jnp.float32) * 0.1,
        "attn_r": jax.random.normal(ks[3], (1, F_OUT), jnp.float32) * 0.1,
        "w_rel":  jax.random.normal(ks[4], (R, D_IN, F_OUT), jnp.float32) * 0.1,
        "loop_w": jax.random.normal(ks[5], (D_IN, F_OUT), jnp.float32) * 0.1,
        "h_bias": jnp.zeros((1, F_OUT), jnp.float32),   # nn.init.zeros_
    }
    adj = (jax.random.uniform(ks[6], (N, N)) < 0.5).astype(jnp.int32)
    etype = jax.random.randint(ks[7], (N, N), 0, R, dtype=jnp.int32)

    # single edge-metadata array: relation id per edge, -1 where there is no edge
    etype_enc = jnp.where(adj > 0, etype, -1).astype(jnp.int32)

    out = horelgat_forward(feat, etype_enc, params)
    out = jax.block_until_ready(out)

    ref = reference_numpy(feat, adj, etype, params)
    # bf16 MXU operands / bf16 logits (f32 accumulation & softmax): loosened tolerance.
    np.testing.assert_allclose(np.asarray(out), ref, rtol=2e-2, atol=2e-2)
    print("KERNEL_OK")
</pallas_src>

<mosaic_0001>
module attributes {stable_mosaic.version = 11 : i64} {
  func.func @_proj_kernel(%arg0: i32, %arg1: memref<32x32xf32, #tpu.memory_space<vmem>>, %arg2: memref<32x640xbf16, #tpu.memory_space<vmem>>, %arg3: memref<32x384xbf16, #tpu.memory_space<vmem>>, %arg4: memref<32x128xf32, #tpu.memory_space<vmem>>, %arg5: memref<32x128xf32, #tpu.memory_space<vmem>>) attributes {dimension_semantics = [#tpu.dimension_semantics<parallel>], iteration_bounds = array<i64: 1>, scalar_prefetch = 0 : i64, scratch_operands = 0 : i64, tpu.core_type = #tpu.core_type<tc>, window_params = [{transform_indices = @transform_0, window_bounds = array<i64: 32, 32>}, {pipeline_mode = #tpu.pipeline_mode<synchronous>, transform_indices = @transform_1, window_bounds = array<i64: 32, 640>}, {transform_indices = @transform_2, window_bounds = array<i64: 32, 384>}, {transform_indices = @transform_3, window_bounds = array<i64: 32, 128>}, {transform_indices = @transform_4, window_bounds = array<i64: 32, 128>}]} {
    %c0 = arith.constant 0 : index
    %c0_0 = arith.constant 0 : index
    %0 = vector.load %arg1[%c0, %c0_0] : memref<32x32xf32, #tpu.memory_space<vmem>>, vector<32x32xf32>
    %1 = arith.truncf %0 : vector<32x32xf32> to vector<32x32xbf16>
    %c0_1 = arith.constant 0 : index
    %c0_2 = arith.constant 0 : index
    %2 = vector.load %arg2[%c0_1, %c0_2] : memref<32x640xbf16, #tpu.memory_space<vmem>>, vector<32x640xbf16>
    %cst = arith.constant dense<0.000000e+00> : vector<32x640xf32>
    %3 = tpu.matmul %1, %2, %cst {dimension_numbers = #tpu.dot_dimension_numbers<[1], [0], [0], [1], [0, 0, 1, 1], [], []>} : vector<32x32xbf16>, vector<32x640xbf16>, vector<32x640xf32> -> vector<32x640xf32>
    %4 = vector.extract_strided_slice %3 {offsets = [0, 0], sizes = [32, 384], strides = [1, 1]} : vector<32x640xf32> to vector<32x384xf32>
    %5 = arith.truncf %4 : vector<32x384xf32> to vector<32x384xbf16>
    %c0_3 = arith.constant 0 : index
    %c0_4 = arith.constant 0 : index
    %6 = vector.load %arg3[%c0_3, %c0_4] : memref<32x384xbf16, #tpu.memory_space<vmem>>, vector<32x384xbf16>
    tpu.vector_store %arg3[%c0_3, %c0_4], %5 {strides = array<i32>} : memref<32x384xbf16, #tpu.memory_space<vmem>>, vector<32x384xbf16>,
    %7 = vector.extract_strided_slice %3 {offsets = [0, 384], sizes = [32, 128], strides = [1, 1]} : vector<32x640xf32> to vector<32x128xf32>
    %c0_5 = arith.constant 0 : index
    %c0_6 = arith.constant 0 : index
    %8 = vector.load %arg4[%c0_5, %c0_6] : memref<32x128xf32, #tpu.memory_space<vmem>>, vector<32x128xf32>
    tpu.vector_store %arg4[%c0_5, %c0_6], %7 {strides = array<i32>} : memref<32x128xf32, #tpu.memory_space<vmem>>, vector<32x128xf32>,
    %9 = vector.extract_strided_slice %3 {offsets = [0, 512], sizes = [32, 128], strides = [1, 1]} : vector<32x640xf32> to vector<32x128xf32>
    %c0_7 = arith.constant 0 : index
    %c0_8 = arith.constant 0 : index
    %10 = vector.load %arg5[%c0_7, %c0_8] : memref<32x128xf32, #tpu.memory_space<vmem>>, vector<32x128xf32>
    tpu.vector_store %arg5[%c0_7, %c0_8], %9 {strides = array<i32>} : memref<32x128xf32, #tpu.memory_space<vmem>>, vector<32x128xf32>,
    return
  }
  func.func @transform_0(%arg0: i32) -> (i32, i32) {
    %c0_i32 = arith.constant 0 : i32
    %c0_i32_0 = arith.constant 0 : i32
    return %arg0, %c0_i32 : i32, i32
  }
  func.func @transform_1(%arg0: i32) -> (i32, i32) {
    %c0_i32 = arith.constant 0 : i32
    %c0_i32_0 = arith.constant 0 : i32
    %c0_i32_1 = arith.constant 0 : i32
    return %c0_i32, %c0_i32_0 : i32, i32
  }
  func.func @transform_2(%arg0: i32) -> (i32, i32) {
    %c0_i32 = arith.constant 0 : i32
    %c0_i32_0 = arith.constant 0 : i32
    return %arg0, %c0_i32 : i32, i32
  }
  func.func @transform_3(%arg0: i32) -> (i32, i32) {
    %c0_i32 = arith.constant 0 : i32
    %c0_i32_0 = arith.constant 0 : i32
    return %arg0, %c0_i32 : i32, i32
  }
  func.func @transform_4(%arg0: i32) -> (i32, i32) {
    %c0_i32 = arith.constant 0 : i32
    %c0_i32_0 = arith.constant 0 : i32
    return %arg0, %c0_i32 : i32, i32
  }
}

</mosaic_0001>

<llo_original>
// kernel: tpu_custom_call.1
$region0: #{tpu_custom_call.1}
  #allocation0 [shape = 'u32[]', space=smem, size = 0x4, offset = 0x4, fixed_abs, tag = 'smem constant byte address 0x4 - core index']
  #allocation1 [shape = 'u32[144,128]{1,0:T(1,128)}', space=vmem, size = 0x12000, scoped, tag = 'internal scratch']
  %s0 = inlined_call_operand.hbm [shape: f32[32,32], index: 0, kind: input, shape index: {}]
  %s1 = inlined_call_operand.hbm [shape: bf16[32,640], index: 1, kind: input, shape index: {}]
  %s2 = inlined_call_operand.hbm [shape: bf16[32,384], index: 2, kind: output, shape index: {0}]
  %s3 = inlined_call_operand.hbm [shape: f32[32,128], index: 3, kind: output, shape index: {1}]
  %s4 = inlined_call_operand.hbm [shape: f32[32,128], index: 4, kind: output, shape index: {2}]
  %5 = xla_tuple %s2, %s3, %s4
  %s6 = sld [smem:[#allocation0]]
  $region42: #{tpu_custom_call.1} parent=0
    _
  %s8 = ssub.s32 1, %s6
  %s9 = scalar_select 0, %s8, %s6
  $region1: #{tpu_custom_call.1} parent=0
    #allocation2 [shape = 'u8[16384]{0}', space=vmem, size = 0x4000, scoped, tag = 'input window, operand 0, single buffered']
    #allocation3 [shape = 's32[1]{0}', space=sflag, size = 0x4, scoped, tag = 'scoped memory for tpu_custom_call.1']
    #allocation4 [shape = 's32[1]{0}', space=sflag, size = 0x4, scoped, tag = 'scoped memory for tpu_custom_call.1']
    #allocation5 [shape = 'u8[40960]{0}', space=vmem, size = 0xa000, scoped, tag = 'input window, operand 1, single buffered']
    #allocation6 [shape = 's32[1]{0}', space=sflag, size = 0x4, scoped, tag = 'scoped memory for tpu_custom_call.1']
    #allocation7 [shape = 'u8[24576]{0}', space=vmem, size = 0x6000, scoped, tag = 'output window, operand 0, single buffered']
    #allocation8 [shape = 'u8[16384]{0}', space=vmem, size = 0x4000, scoped, tag = 'output window, operand 1, single buffered']
    #allocation9 [shape = 's32[1]{0}', space=sflag, size = 0x4, scoped, tag = 'scoped memory for tpu_custom_call.1']
    #allocation10 [shape = 'u8[16384]{0}', space=vmem, size = 0x4000, scoped, tag = 'output window, operand 2, single buffered']
    %10 = vsyncpa [#allocation3], 0
    %11 = vsyncpa [#allocation6], 0
    %12 = vsyncpa [#allocation4], 0
    %13 = vsyncpa [#allocation9], 0
    // Predicated region
    $region2: #{tpu_custom_call.1} parent=1 // pred_check
      _
    $region3: #{tpu_custom_call.1} parent=1 // pred_check_branch
      %15 = sbr.rel (0) target = $region5
    $region4: #{tpu_custom_call.1} parent=1 // pred_region
      %s17 = ssub.s32 512, 512
      %18 = vsyncadd [#allocation3], %s17
      %s19 = sshll.u32 [#allocation2], 4
      %s20 = int_to_ptr.vmem [resolvable:$true] %s19
      %25 = dma.hbm_to_vmem [thread:$0]  %s0, 512, %s20, [#allocation3], 128, 128, 8
    $region5: #{tpu_custom_call.1} parent=1 // pred_fallthru
      _
    // Predicated region
    $region6: #{tpu_custom_call.1} parent=1 // pred_check
      _
    $region7: #{tpu_custom_call.1} parent=1 // pred_check_branch
      %27 = sbr.rel (0) target = $region9
    $region8: #{tpu_custom_call.1} parent=1 // pred_region
      %s29 = ssub.s32 1280, 1280
      %30 = vsyncadd [#allocation6], %s29
      %s31 = sshll.u32 [#allocation5], 4
      %s32 = int_to_ptr.vmem [resolvable:$true] %s31
      %37 = dma.hbm_to_vmem [thread:$0]  %s1, 1280, %s32, [#allocation6], 320, 320, 20
    $region9: #{tpu_custom_call.1} parent=1 // pred_fallthru
      _
    // Predicated region
    $region10: #{tpu_custom_call.1} parent=1 // pred_check
      _
    $region11: #{tpu_custom_call.1} parent=1 // pred_check_branch
      %39 = sbr.rel (0) target = $region13
    $region12: #{tpu_custom_call.1} parent=1 // pred_region
      %40 = dma.done [#allocation3], 512
    $region13: #{tpu_custom_call.1} parent=1 // pred_fallthru
      _
    // Predicated region
    $region14: #{tpu_custom_call.1} parent=1 // pred_check
      _
    $region15: #{tpu_custom_call.1} parent=1 // pred_check_branch
      %42 = sbr.rel (0) target = $region17
    $region16: #{tpu_custom_call.1} parent=1 // pred_region
      %43 = dma.done [#allocation6], 1280
    $region17: #{tpu_custom_call.1} parent=1 // pred_fallthru
      _
    %v45 = vld [vmem:[#allocation2] sm:$0xff]
    %v46 = vld [vmem:[#allocation2 + $0x8] sm:$0xff]
    %v47 = vld [vmem:[#allocation2 + $0x10] sm:$0xff]
    %v48 = vld [vmem:[#allocation2 + $0x18] sm:$0xff]
    %v49 = vpack.c.bf16 %v46, %v45
    %v50 = vpack.c.bf16 %v48, %v47
    %v51 = vld [vmem:[#allocation5] sm:$0xff]
    %v52 = vld [vmem:[#allocation5 + $0x8] sm:$0xff]
    %v53 = vld [vmem:[#allocation5 + $0x10] sm:$0xf]
    %v54 = vld [vmem:[#allocation5 + $0x14] sm:$0xff]
    %v55 = vld [vmem:[#allocation5 + $0x1c] sm:$0xff]
    %v56 = vld [vmem:[#allocation5 + $0x24] sm:$0xf]
    %v57 = vld [vmem:[#allocation5 + $0x28] sm:$0xff]
    %v58 = vld [vmem:[#allocation5 + $0x30] sm:$0xff]
    %v59 = vld [vmem:[#allocation5 + $0x38] sm:$0xf]
    %v60 = vld [vmem:[#allocation5 + $0x3c] sm:$0xff]
    %v61 = vld [vmem:[#allocation5 + $0x44] sm:$0xff]
    %v62 = vld [vmem:[#allocation5 + $0x4c] sm:$0xf]
    %v75 = vunpack.c.l.b16 %v51
    %v76 = vunpack.c.h.b16 %v51
    %v77 = vunpack.c.l.b16 %v52
    %v78 = vunpack.c.h.b16 %v52
    %v79 = vunpack.c.l.b16 %v53
    %v80 = vunpack.c.l.b16 %v54
    %v81 = vunpack.c.h.b16 %v54
    %v82 = vunpack.c.l.b16 %v55
    %v83 = vunpack.c.h.b16 %v55
    %v84 = vunpack.c.l.b16 %v56
    %v85 = vunpack.c.l.b16 %v57
    %v86 = vunpack.c.h.b16 %v57
    %v87 = vunpack.c.l.b16 %v58
    %v88 = vunpack.c.h.b16 %v58
    %v89 = vunpack.c.l.b16 %v59
    %v90 = vunpack.c.l.b16 %v60
    %v91 = vunpack.c.h.b16 %v60
    %v92 = vunpack.c.l.b16 %v61
    %v93 = vunpack.c.h.b16 %v61
    %v94 = vunpack.c.l.b16 %v62
    %v95 = vpack.c.b16 %v80, %v75
    %v96 = vpack.c.b16 %v81, %v76
    %v97 = vpack.c.b16 %v82, %v77
    %v98 = vpack.c.b16 %v83, %v78
    %v99 = vpack.c.b16 %v84, %v79
    %v100 = vpack.c.b16 %v90, %v85
    %v101 = vpack.c.b16 %v91, %v86
    %v102 = vpack.c.b16 %v92, %v87
    %v103 = vpack.c.b16 %v93, %v88
    %v104 = vpack.c.b16 %v94, %v89
    %vm115 = vcmask 261120
    %v117 = vsel %vm115, %v49, 0
    %v120 = vsel %vm115, %v50, 0
    %122 = vmatprep.subr.bf16.mxu0 0
    %123 = vmatpush1.bf16.msra.mxu0 0
    %124 = vmatprep.subr.bf16.mxu0 0
    %125 = vmatpush1.bf16.msra.mxu0 0
    %126 = vmatprep.subr.bf16.mxu0 0
    %127 = vmatpush1.bf16.msra.mxu0 0
    %128 = vmatprep.subr.bf16.mxu0 0
    %129 = vmatpush1.bf16.msra.mxu0 0
    %130 = vmatprep.subr.bf16.mxu0 0
    %131 = vmatpush1.bf16.msra.mxu0 0
    %132 = vmatprep.subr.bf16.mxu0 0
    %133 = vmatpush1.bf16.msra.mxu0 0
    %134 = vmatprep.subr.bf16.mxu0 %v101
    %135 = vmatpush1.bf16.msra.mxu0 %v100
    %136 = vmatprep.subr.bf16.mxu0 %v96
    %137 = vmatpush1.bf16.msra.mxu0 %v95
    %138 = vmatprep.subr.bf16.mxu0 0
    %139 = vmatpush2.bf16.msra.mxu0 0
    %140 = vmatprep.subr.bf16.mxu0 0
    %141 = vmatpush2.bf16.msra.mxu0 0
    %142 = vmatprep.subr.bf16.mxu0 0
    %143 = vmatpush2.bf16.msra.mxu0 0
    %144 = vmatprep.subr.bf16.mxu0 0
    %145 = vmatpush2.bf16.msra.mxu0 0
    %146 = vmatprep.subr.bf16.mxu0 0
    %147 = vmatpush2.bf16.msra.mxu0 0
    %148 = vmatprep.subr.bf16.mxu0 0
    %149 = vmatpush2.bf16.msra.mxu0 0
    %150 = vmatprep.subr.bf16.mxu0 0
    %151 = vmatpush2.bf16.msra.mxu0 0
    %152 = vmatprep.subr.bf16.mxu0 0
    %153 = vmatpush2.bf16.msra.mxu0 0
    %154 = vmatprep.mubr.bf16.mxu0 0
    %155 = vmatmul.mubr.bf16.gmra.mxu0 %v117
    %v156 = vpop.f32.mrf.mxu0
    %v157 = vadd.f32 0.0, %v156
    %v158 = vpop.f32.mrf.mxu0
    %v159 = vadd.f32 0.0, %v158
    %v160 = vpop.f32.mrf.mxu0
    %v161 = vadd.f32 0.0, %v160
    %v162 = vpop.f32.mrf.mxu0
    %v163 = vadd.f32 0.0, %v162
    %164 = vmatprep.mubr.bf16.mxu0 0
    %165 = vmatmul.mubr.bf16.gmra.mxu0 %v120
    %v166 = vpop.f32.mrf.mxu0
    %v167 = vadd.f32 0.0, %v166
    %v168 = vpop.f32.mrf.mxu0
    %v169 = vadd.f32 0.0, %v168
    %v170 = vpop.f32.mrf.mxu0
    %v171 = vadd.f32 0.0, %v170
    %v172 = vpop.f32.mrf.mxu0
    %v173 = vadd.f32 0.0, %v172
    %174 = vdwg.mxu0
    %175 = vmatprep.subr.bf16.mxu0 0
    %176 = vmatpush1.bf16.msra.mxu0 0
    %177 = vmatprep.subr.bf16.mxu0 0
    %178 = vmatpush1.bf16.msra.mxu0 0
    %179 = vmatprep.subr.bf16.mxu0 0
    %180 = vmatpush1.bf16.msra.mxu0 0
    %181 = vmatprep.subr.bf16.mxu0 0
    %182 = vmatpush1.bf16.msra.mxu0 0
    %183 = vmatprep.subr.bf16.mxu0 0
    %184 = vmatpush1.bf16.msra.mxu0 0
    %185 = vmatprep.subr.bf16.mxu0 0
    %186 = vmatpush1.bf16.msra.mxu0 0
    %187 = vmatprep.subr.bf16.mxu0 %v103
    %188 = vmatpush1.bf16.msra.mxu0 %v102
    %189 = vmatprep.subr.bf16.mxu0 %v98
    %190 = vmatpush1.bf16.msra.mxu0 %v97
    %191 = vmatprep.subr.bf16.mxu0 0
    %192 = vmatpush2.bf16.msra.mxu0 0
    %193 = vmatprep.subr.bf16.mxu0 0
    %194 = vmatpush2.bf16.msra.mxu0 0
    %195 = vmatprep.subr.bf16.mxu0 0
    %196 = vmatpush2.bf16.msra.mxu0 0
    %197 = vmatprep.subr.bf16.mxu0 0
    %198 = vmatpush2.bf16.msra.mxu0 0
    %199 = vmatprep.subr.bf16.mxu0 0
    %200 = vmatpush2.bf16.msra.mxu0 0
    %201 = vmatprep.subr.bf16.mxu0 0
    %202 = vmatpush2.bf16.msra.mxu0 0
    %203 = vmatprep.subr.bf16.mxu0 0
    %204 = vmatpush2.bf16.msra.mxu0 0
    %205 = vmatprep.subr.bf16.mxu0 0
    %206 = vmatpush2.bf16.msra.mxu0 0
    %207 = vmatprep.mubr.bf16.mxu0 0
    %208 = vmatmul.mubr.bf16.gmra.mxu0 %v117
    %v209 = vpop.f32.mrf.mxu0
    %v210 = vadd.f32 0.0, %v209
    %v211 = vpop.f32.mrf.mxu0
    %v212 = vadd.f32 0.0, %v211
    %v213 = vpop.f32.mrf.mxu0
    %v214 = vadd.f32 0.0, %v213
    %v215 = vpop.f32.mrf.mxu0
    %v216 = vadd.f32 0.0, %v215
    %217 = vmatprep.mubr.bf16.mxu0 0
    %218 = vmatmul.mubr.bf16.gmra.mxu0 %v120
    %v219 = vpop.f32.mrf.mxu0
    %v220 = vadd.f32 0.0, %v219
    %v221 = vpop.f32.mrf.mxu0
    %v222 = vadd.f32 0.0, %v221
    %v223 = vpop.f32.mrf.mxu0
    %v224 = vadd.f32 0.0, %v223
    %v225 = vpop.f32.mrf.mxu0
    %v226 = vadd.f32 0.0, %v225
    %227 = vdwg.mxu0
    %228 = vmatprep.subr.bf16.mxu0 0
    %229 = vmatpush1.bf16.msra.mxu0 0
    %230 = vmatprep.subr.bf16.mxu0 0
    %231 = vmatpush1.bf16.msra.mxu0 0
    %232 = vmatprep.subr.bf16.mxu0 0
    %233 = vmatpush1.bf16.msra.mxu0 0
    %234 = vmatprep.subr.bf16.mxu0 0
    %235 = vmatpush1.bf16.msra.mxu0 0
    %236 = vmatprep.subr.bf16.mxu0 0
    %237 = vmatpush1.bf16.msra.mxu0 0
    %238 = vmatprep.subr.bf16.mxu0 0
    %239 = vmatpush1.bf16.msra.mxu0 0
    %240 = vmatprep.subr.bf16.mxu0 0
    %241 = vmatpush1.bf16.msra.mxu0 %v104
    %242 = vmatprep.subr.bf16.mxu0 0
    %243 = vmatpush1.bf16.msra.mxu0 %v99
    %244 = vmatprep.subr.bf16.mxu0 0
    %245 = vmatpush2.bf16.msra.mxu0 0
    %246 = vmatprep.subr.bf16.mxu0 0
    %247 = vmatpush2.bf16.msra.mxu0 0
    %248 = vmatprep.subr.bf16.mxu0 0
    %249 = vmatpush2.bf16.msra.mxu0 0
    %250 = vmatprep.subr.bf16.mxu0 0
    %251 = vmatpush2.bf16.msra.mxu0 0
    %252 = vmatprep.subr.bf16.mxu0 0
    %253 = vmatpush2.bf16.msra.mxu0 0
    %254 = vmatprep.subr.bf16.mxu0 0
    %255 = vmatpush2.bf16.msra.mxu0 0
    %256 = vmatprep.subr.bf16.mxu0 0
    %257 = vmatpush2.bf16.msra.mxu0 0
    %258 = vmatprep.subr.bf16.mxu0 0
    %259 = vmatpush2.bf16.msra.mxu0 0
    %260 = vmatprep.mubr.bf16.mxu0 0
    %261 = vmatmul.mubr.bf16.gmra.mxu0 %v117
    %v262 = vpop.f32.mrf.mxu0
    %v263 = vadd.f32 0.0, %v262
    %v264 = vpop.f32.mrf.mxu0
    %v265 = vpop.f32.mrf.mxu0
    %v266 = vadd.f32 0.0, %v265
    %v267 = vpop.f32.mrf.mxu0
    %268 = vmatprep.mubr.bf16.mxu0 0
    %269 = vmatmul.mubr.bf16.gmra.mxu0 %v120
    %v270 = vpop.f32.mrf.mxu0
    %v271 = vadd.f32 0.0, %v270
    %v272 = vpop.f32.mrf.mxu0
    %v273 = vpop.f32.mrf.mxu0
    %v274 = vadd.f32 0.0, %v273
    %v275 = vpop.f32.mrf.mxu0
    %276 = vdwg.mxu0
    %v277 = vpack.c.bf16 %v161, %v157
    %v278 = vpack.c.bf16 %v163, %v159
    %v279 = vpack.c.bf16 %v214, %v210
    %v280 = vpack.c.bf16 %v171, %v167
    %v281 = vpack.c.bf16 %v173, %v169
    %v282 = vpack.c.bf16 %v224, %v220
    %v289 = vunpack.c.l.b16 %v277
    %v290 = vunpack.c.l.b16 %v278
    %v291 = vunpack.c.l.b16 %v279
    %v292 = vunpack.c.h.b16 %v277
    %v293 = vunpack.c.h.b16 %v278
    %v294 = vunpack.c.h.b16 %v279
    %v295 = vunpack.c.l.b16 %v280
    %v296 = vunpack.c.l.b16 %v281
    %v297 = vunpack.c.l.b16 %v282
    %v298 = vunpack.c.h.b16 %v280
    %v299 = vunpack.c.h.b16 %v281
    %v300 = vunpack.c.h.b16 %v282
    %v301 = vpack.c.b16 %v290, %v289
    %v302 = vpack.c.b16 %v291, %v291
    %v303 = vpack.c.b16 %v293, %v292
    %v304 = vpack.c.b16 %v294, %v294
    %v305 = vpack.c.b16 %v296, %v295
    %v306 = vpack.c.b16 %v297, %v297
    %v307 = vpack.c.b16 %v299, %v298
    %v308 = vpack.c.b16 %v300, %v300
    %317 = vst [vmem:[#allocation7] sm:$0xff] %v301
    %318 = vst [vmem:[#allocation7 + $0x8] sm:$0xf] %v302
    %319 = vst [vmem:[#allocation7 + $0xc] sm:$0xff] %v303
    %320 = vst [vmem:[#allocation7 + $0x14] sm:$0xf] %v304
    %321 = vst [vmem:[#allocation7 + $0x18] sm:$0xff] %v305
    %322 = vst [vmem:[#allocation7 + $0x20] sm:$0xf] %v306
    %323 = vst [vmem:[#allocation7 + $0x24] sm:$0xff] %v307
    %324 = vst [vmem:[#allocation7 + $0x2c] sm:$0xf] %v308
    %325 = vst [vmem:[#allocation8] sm:$0xff] %v212
    %326 = vst [vmem:[#allocation8 + $0x8] sm:$0xff] %v216
    %327 = vst [vmem:[#allocation8 + $0x10] sm:$0xff] %v222
    %328 = vst [vmem:[#allocation8 + $0x18] sm:$0xff] %v226
    %329 = vst [vmem:[#allocation10] sm:$0xff] %v263
    %330 = vst [vmem:[#allocation10 + $0x8] sm:$0xff] %v266
    %331 = vst [vmem:[#allocation10 + $0x10] sm:$0xff] %v271
    %332 = vst [vmem:[#allocation10 + $0x18] sm:$0xff] %v274
    // Predicated region
    $region18: #{tpu_custom_call.1} parent=1 // pred_check
      _
    $region19: #{tpu_custom_call.1} parent=1 // pred_check_branch
      %334 = sbr.rel (0) target = $region21
    $region20: #{tpu_custom_call.1} parent=1 // pred_region
      %s336 = ssub.s32 768, 768
      %337 = vsyncadd [#allocation4], %s336
      %s338 = sshll.u32 [#allocation7], 4
      %s339 = int_to_ptr.vmem [resolvable:$true] %s338
      %344 = dma.vmem_to_hbm [thread:$0]  %s339, 768, %s2, [#allocation4], 192, 192, 12
    $region21: #{tpu_custom_call.1} parent=1 // pred_fallthru
      _
    // Predicated region
    $region22: #{tpu_custom_call.1} parent=1 // pred_check
      _
    $region23: #{tpu_custom_call.1} parent=1 // pred_check_branch
      %346 = sbr.rel (0) target = $region25
    $region24: #{tpu_custom_call.1} parent=1 // pred_region
      %s348 = ssub.s32 512, 512
      %349 = vsyncadd [#allocation9], %s348
      %s350 = sshll.u32 [#allocation8], 4
      %s351 = int_to_ptr.vmem [resolvable:$true] %s350
      %356 = dma.vmem_to_hbm [thread:$0]  %s351, 512, %s3, [#allocation9], 128, 128, 8
    $region25: #{tpu_custom_call.1} parent=1 // pred_fallthru
      _
    // Predicated region
    $region26: #{tpu_custom_call.1} parent=1 // pred_check
      _
    $region27: #{tpu_custom_call.1} parent=1 // pred_check_branch
      %358 = sbr.rel (0) target = $region29
    $region28: #{tpu_custom_call.1} parent=1 // pred_region
      %s360 = ssub.s32 512, 512
      %361 = vsyncadd [#allocation9], %s360
      %s362 = sshll.u32 [#allocation10], 4
      %s363 = int_to_ptr.vmem [resolvable:$true] %s362
      %368 = dma.vmem_to_hbm [thread:$0]  %s363, 512, %s4, [#allocation9], 128, 128, 8
    $region29: #{tpu_custom_call.1} parent=1 // pred_fallthru
      _
    // Predicated region
    $region30: #{tpu_custom_call.1} parent=1 // pred_check
      _
    $region31: #{tpu_custom_call.1} parent=1 // pred_check_branch
      %370 = sbr.rel (0) target = $region33
    $region32: #{tpu_custom_call.1} parent=1 // pred_region
      %371 = dma.done [#allocation4], 768
    $region33: #{tpu_custom_call.1} parent=1 // pred_fallthru
      _
    // Predicated region
    $region34: #{tpu_custom_call.1} parent=1 // pred_check
      _
    $region35: #{tpu_custom_call.1} parent=1 // pred_check_branch
      %373 = sbr.rel (0) target = $region37
    $region36: #{tpu_custom_call.1} parent=1 // pred_region
      %374 = dma.done [#allocation9], 512
    $region37: #{tpu_custom_call.1} parent=1 // pred_fallthru
      _
    // Predicated region
    $region38: #{tpu_custom_call.1} parent=1 // pred_check
      _
    $region39: #{tpu_custom_call.1} parent=1 // pred_check_branch
      %376 = sbr.rel (0) target = $region41
    $region40: #{tpu_custom_call.1} parent=1 // pred_region
      %377 = dma.done [#allocation9], 512
    $region41: #{tpu_custom_call.1} parent=1 // pred_fallthru
      _
    %378 = vsyncpa [#allocation3], 1
    %379 = vsyncpa [#allocation6], 1
    %380 = vsyncpa [#allocation4], 1
    %381 = vsyncpa [#allocation9], 1

</llo_original>
